<compile_context>
chip_gen: v7x
topology: tpu7x:2x2x1
jax: 0.10.0
libtpu: 0.0.40
codegen_flags: <defaults>
</compile_context>

<pallas_src>
import numpy as np
import jax
import jax.numpy as jnp
from jax.experimental import pallas as pl
from jax.experimental.pallas import tpu as pltpu


_SMALL_PROBLEM_BYTES = 2 * 1024 * 1024  # fast-path threshold (total operand bytes)


def _round_up(x: int, m: int) -> int:
    return ((x + m - 1) // m) * m


def _choose_tile(dim: int, align: int, target: int) -> int:
    """Largest multiple of `align` that divides `dim` and is <= target.

    `dim` is assumed to already be a multiple of `align`, so `align` always
    works as a fallback.  Choosing a divisor avoids extra padding inflation.
    """
    best = align
    t = align
    limit = min(dim, target)
    while t <= limit:
        if dim % t == 0:
            best = t
        t += align
    return best


# ---------------------------------------------------------------------------
# Uniform tiled GEMM:  out[M, N] = a[M, K] @ b[K, N]   (f32 MXU accumulation)
# ---------------------------------------------------------------------------
def _matmul_kernel(a_ref, b_ref, o_ref, acc_ref):
    k = pl.program_id(2)

    @pl.when(k == 0)
    def _():
        acc_ref[...] = jnp.zeros_like(acc_ref)

    acc_ref[...] += jnp.dot(
        a_ref[...], b_ref[...], preferred_element_type=jnp.float32
    )

    @pl.when(k == pl.num_programs(2) - 1)
    def _():
        o_ref[...] = acc_ref[...].astype(o_ref.dtype)


def _pallas_matmul(a, b, *, out_dtype, tm_target=256, tn_target=512, tk_target=512):
    """Tiled MXU matmul.  M must be a multiple of 8; N a multiple of 128;
    K a multiple of 8 (K is split only when it is a multiple of 128)."""
    M, K = a.shape
    K2, N = b.shape
    assert K == K2, (a.shape, b.shape)

    tm = _choose_tile(M, 8, tm_target)
    tn = _choose_tile(N, 128, tn_target)
    if K % 128 == 0:
        tk = _choose_tile(K, 128, tk_target)
    else:
        tk = K  # full-K block (K only guaranteed sublane-aligned)

    grid = (M // tm, N // tn, K // tk)

    isa = a.dtype.itemsize
    isb = b.dtype.itemsize
    iso = np.dtype(out_dtype).itemsize
    # Double-buffered a/b/out tiles + f32 accumulator.
    vmem_usage = (2 * tm * tk * isa + 2 * tk * tn * isb
                  + 2 * tm * tn * iso + tm * tn * 4)
    # Explicit budget: plenty of headroom, but always within v7x's 64 MiB.
    vmem_limit = min(max(int(vmem_usage * 1.5), 32 << 20), 48 << 20)

    cost = pl.CostEstimate(
        flops=2 * M * N * K,
        transcendentals=0,
        bytes_accessed=M * K * isa + K * N * isb + M * N * iso,
    )

    return pl.pallas_call(
        _matmul_kernel,
        out_shape=jax.ShapeDtypeStruct((M, N), out_dtype),
        grid_spec=pltpu.PrefetchScalarGridSpec(
            num_scalar_prefetch=0,
            grid=grid,
            in_specs=[
                pl.BlockSpec((tm, tk), lambda i, j, k: (i, k)),
                pl.BlockSpec((tk, tn), lambda i, j, k: (k, j)),
            ],
            out_specs=pl.BlockSpec((tm, tn), lambda i, j, k: (i, j)),
            scratch_shapes=[pltpu.VMEM((tm, tn), jnp.float32)],
        ),
        compiler_params=pltpu.CompilerParams(
            dimension_semantics=("parallel", "parallel", "arbitrary"),
            vmem_limit_bytes=vmem_limit,
        ),
        cost_estimate=cost,
    )(a, b)


# ---------------------------------------------------------------------------
# Small-problem fast path: single un-gridded program, whole arrays in VMEM.
# ---------------------------------------------------------------------------
def _fused_small_kernel(x_ref, wcol_ref, wrow_ref, o_ref):
    # Same association as the PyTorch module: tmp = X @ Wcol, out = Wrow @ tmp.
    tmp = jnp.dot(x_ref[...], wcol_ref[...], preferred_element_type=jnp.float32)
    out = jnp.dot(wrow_ref[...].astype(jnp.float32), tmp,
                  preferred_element_type=jnp.float32)
    o_ref[...] = out.astype(o_ref.dtype)


def _fused_small(xp, wcol_p, wrow_p, out_dtype):
    Rp, Cp = xp.shape
    isz = xp.dtype.itemsize
    cost = pl.CostEstimate(
        flops=2 * Rp * Cp * Cp + 2 * Rp * Rp * Cp,
        transcendentals=0,
        bytes_accessed=(xp.size + wcol_p.size + wrow_p.size) * isz
        + Rp * Cp * np.dtype(out_dtype).itemsize,
    )
    return pl.pallas_call(
        _fused_small_kernel,
        out_shape=jax.ShapeDtypeStruct((Rp, Cp), out_dtype),
        in_specs=[pl.BlockSpec(memory_space=pltpu.MemorySpace.VMEM)] * 3,
        out_specs=pl.BlockSpec(memory_space=pltpu.MemorySpace.VMEM),
        compiler_params=pltpu.CompilerParams(vmem_limit_bytes=32 << 20),
        cost_estimate=cost,
    )(xp, wcol_p, wrow_p)


# ---------------------------------------------------------------------------
# Public forward:  out = weight_row @ (x @ weight_column)
# ---------------------------------------------------------------------------
def re_neural_network_forward(x, weight_column, weight_row, *,
                              compute_dtype=jnp.bfloat16,
                              intermediate_dtype=None):
    """x: (R, C); weight_column: (C, C); weight_row: (R, R).  Returns (R, C)
    in x.dtype.  compute_dtype feeds the MXU (accumulation is always f32)."""
    R, C = x.shape
    assert weight_column.shape == (C, C)
    assert weight_row.shape == (R, R)

    out_dtype = x.dtype
    if compute_dtype is None:
        compute_dtype = jnp.bfloat16
    if intermediate_dtype is None:
        intermediate_dtype = compute_dtype

    # Zero-pad to sublane(8)/lane(128)-aligned extents only.  Zero padding is
    # exact for this bilinear form:
    #   (Wrow_p @ (X_p @ Wcol_p))[:R, :C] == Wrow @ (X @ Wcol)
    Rp = _round_up(R, 8)
    Cp = _round_up(C, 128)

    xp = jnp.pad(x, ((0, Rp - R), (0, Cp - C))).astype(compute_dtype)
    wcol_p = jnp.pad(weight_column,
                     ((0, Cp - C), (0, Cp - C))).astype(compute_dtype)
    wrow_p = jnp.pad(weight_row,
                     ((0, Rp - R), (0, Rp - R))).astype(compute_dtype)

    total_bytes = ((xp.size + wcol_p.size + wrow_p.size + Rp * Cp)
                   * np.dtype(compute_dtype).itemsize)

    if total_bytes <= _SMALL_PROBLEM_BYTES:
        # Grid/pipeline overhead dominates at this size: single program.
        out_p = _fused_small(xp, wcol_p, wrow_p, out_dtype)
    else:
        # Y = Wrow @ X once (associativity: Wrow @ (X @ Wcol) == (Wrow @ X) @ Wcol),
        # then a uniform tiled GEMM out = Y @ Wcol.  No bursty step, no Wrow
        # re-streaming, no resident X.
        y = _pallas_matmul(wrow_p, xp, out_dtype=intermediate_dtype)
        out_p = _pallas_matmul(y, wcol_p, out_dtype=out_dtype)

    return out_p[:R, :C]


if __name__ == "__main__":
    key = jax.random.PRNGKey(0)
    k1, k2, k3, k4, k5, k6 = jax.random.split(key, 6)

    # Case 1: the module's implied small shapes (matrix_row=16, matrix_column=32).
    # Exercises the un-gridded fast path.
    R1, C1 = 16, 32
    x1 = jax.random.normal(k1, (R1, C1), dtype=jnp.float32)
    wc1 = jax.random.uniform(k2, (C1, C1), dtype=jnp.float32)  # reset_parameters: U[0,1)
    wr1 = jax.random.uniform(k3, (R1, R1), dtype=jnp.float32)
    ref1 = wr1 @ (x1 @ wc1)

    out1_f32 = jax.block_until_ready(
        re_neural_network_forward(x1, wc1, wr1, compute_dtype=jnp.float32))
    assert out1_f32.shape == (R1, C1) and out1_f32.dtype == x1.dtype
    assert jnp.allclose(out1_f32, ref1, atol=1e-3, rtol=1e-3)

    out1_bf16 = jax.block_until_ready(re_neural_network_forward(x1, wc1, wr1))
    rel1 = jnp.max(jnp.abs(out1_bf16 - ref1)) / (jnp.max(jnp.abs(ref1)) + 1e-6)
    assert rel1 < 2e-2, float(rel1)

    # Case 2: a larger problem that exercises the multi-tile GEMM path
    # (first GEMM grid (1,2,1), second GEMM grid (1,2,2)).
    R2, C2 = 128, 1024
    x2 = jax.random.normal(k4, (R2, C2), dtype=jnp.float32)
    wc2 = jax.random.uniform(k5, (C2, C2), dtype=jnp.float32)
    wr2 = jax.random.uniform(k6, (R2, R2), dtype=jnp.float32)
    ref2 = wr2 @ (x2 @ wc2)

    out2_f32 = jax.block_until_ready(
        re_neural_network_forward(x2, wc2, wr2, compute_dtype=jnp.float32))
    rel2_f32 = jnp.max(jnp.abs(out2_f32 - ref2)) / (jnp.max(jnp.abs(ref2)) + 1e-6)
    assert out2_f32.shape == (R2, C2)
    assert rel2_f32 < 1e-4, float(rel2_f32)

    out2_bf16 = jax.block_until_ready(re_neural_network_forward(x2, wc2, wr2))
    rel2 = jnp.max(jnp.abs(out2_bf16 - ref2)) / (jnp.max(jnp.abs(ref2)) + 1e-6)
    assert rel2 < 3e-2, float(rel2)

    print("KERNEL_OK")
</pallas_src>

<mosaic_0001>
module attributes {stable_mosaic.version = 11 : i64} {
  func.func @_fused_small_kernel(%arg0: memref<16x128xf32, #tpu.memory_space<vmem>>, %arg1: memref<128x128xf32, #tpu.memory_space<vmem>>, %arg2: memref<16x16xf32, #tpu.memory_space<vmem>>, %arg3: memref<16x128xf32, #tpu.memory_space<vmem>>) attributes {dimension_semantics = [], scalar_prefetch = 0 : i64, scratch_operands = 0 : i64, tpu.core_type = #tpu.core_type<tc>} {
    %c0 = arith.constant 0 : index
    %c0_0 = arith.constant 0 : index
    %0 = vector.load %arg0[%c0, %c0_0] : memref<16x128xf32, #tpu.memory_space<vmem>>, vector<16x128xf32>
    %c0_1 = arith.constant 0 : index
    %c0_2 = arith.constant 0 : index
    %1 = vector.load %arg1[%c0_1, %c0_2] : memref<128x128xf32, #tpu.memory_space<vmem>>, vector<128x128xf32>
    %cst = arith.constant dense<0.000000e+00> : vector<16x128xf32>
    %2 = tpu.matmul %0, %1, %cst {dimension_numbers = #tpu.dot_dimension_numbers<[1], [0], [0], [1], [0, 0, 1, 1], [], []>} : vector<16x128xf32>, vector<128x128xf32>, vector<16x128xf32> -> vector<16x128xf32>
    %c0_3 = arith.constant 0 : index
    %c0_4 = arith.constant 0 : index
    %3 = vector.load %arg2[%c0_3, %c0_4] : memref<16x16xf32, #tpu.memory_space<vmem>>, vector<16x16xf32>
    %cst_5 = arith.constant dense<0.000000e+00> : vector<16x128xf32>
    %4 = tpu.matmul %3, %2, %cst_5 {dimension_numbers = #tpu.dot_dimension_numbers<[1], [0], [0], [1], [0, 0, 1, 1], [], []>} : vector<16x16xf32>, vector<16x128xf32>, vector<16x128xf32> -> vector<16x128xf32>
    %c0_6 = arith.constant 0 : index
    %c0_7 = arith.constant 0 : index
    %5 = vector.load %arg3[%c0_6, %c0_7] : memref<16x128xf32, #tpu.memory_space<vmem>>, vector<16x128xf32>
    tpu.vector_store %arg3[%c0_6, %c0_7], %4 {strides = array<i32>} : memref<16x128xf32, #tpu.memory_space<vmem>>, vector<16x128xf32>,
    return
  }
}

</mosaic_0001>

<llo_original>
// kernel: tpu_custom_call.1
$region0: #{tpu_custom_call.1}
  #allocation0 [shape = 'u32[]', space=smem, size = 0x4, offset = 0x4, fixed_abs, tag = 'smem constant byte address 0x4 - core index']
  #allocation1 [shape = 'u32[144,128]{1,0:T(1,128)}', space=vmem, size = 0x12000, scoped, tag = 'internal scratch']
  %s0 = inlined_call_operand.hbm [shape: f32[16,128], index: 0, kind: input, shape index: {}]
  %s1 = inlined_call_operand.hbm [shape: f32[128,128], index: 1, kind: input, shape index: {}]
  %s2 = inlined_call_operand.hbm [shape: f32[16,16], index: 2, kind: input, shape index: {}]
  %s3 = inlined_call_operand.hbm [shape: f32[16,128], index: 3, kind: output, shape index: {}]
  %s4 = sld [smem:[#allocation0]]
  $region34: #{tpu_custom_call.1} parent=0
    _
  %s6 = ssub.s32 1, %s4
  %s7 = scalar_select 0, %s6, %s4
  $region1: #{tpu_custom_call.1} parent=0
    #allocation2 [shape = 'u8[8192]{0}', space=vmem, size = 0x2000, scoped, tag = 'input window, operand 0, single buffered']
    #allocation3 [shape = 's32[1]{0}', space=sflag, size = 0x4, scoped, tag = 'scoped memory for tpu_custom_call.1']
    #allocation4 [shape = 's32[1]{0}', space=sflag, size = 0x4, scoped, tag = 'scoped memory for tpu_custom_call.1']
    #allocation5 [shape = 'u8[65536]{0}', space=vmem, size = 0x10000, scoped, tag = 'input window, operand 1, single buffered']
    #allocation6 [shape = 's32[1]{0}', space=sflag, size = 0x4, scoped, tag = 'scoped memory for tpu_custom_call.1']
    #allocation7 [shape = 'u8[8192]{0}', space=vmem, size = 0x2000, scoped, tag = 'input window, operand 2, single buffered']
    #allocation8 [shape = 'u8[8192]{0}', space=vmem, size = 0x2000, scoped, tag = 'output window, operand 0, single buffered']
    %8 = vsyncpa [#allocation3], 0
    %9 = vsyncpa [#allocation6], 0
    %10 = vsyncpa [#allocation4], 0
    // Predicated region
    $region2: #{tpu_custom_call.1} parent=1 // pred_check
      _
    $region3: #{tpu_custom_call.1} parent=1 // pred_check_branch
      %12 = sbr.rel (0) target = $region5
    $region4: #{tpu_custom_call.1} parent=1 // pred_region
      %s14 = ssub.s32 256, 256
      %15 = vsyncadd [#allocation3], %s14
      %s16 = sshll.u32 [#allocation2], 4
      %s17 = int_to_ptr.vmem [resolvable:$true] %s16
      %22 = dma.hbm_to_vmem [thread:$0]  %s0, 256, %s17, [#allocation3], 128, 128, 8
    $region5: #{tpu_custom_call.1} parent=1 // pred_fallthru
      _
    // Predicated region
    $region6: #{tpu_custom_call.1} parent=1 // pred_check
      _
    $region7: #{tpu_custom_call.1} parent=1 // pred_check_branch
      %24 = sbr.rel (0) target = $region9
    $region8: #{tpu_custom_call.1} parent=1 // pred_region
      %s26 = ssub.s32 2048, 2048
      %27 = vsyncadd [#allocation6], %s26
      %s28 = sshll.u32 [#allocation5], 4
      %s29 = int_to_ptr.vmem [resolvable:$true] %s28
      %34 = dma.hbm_to_vmem [thread:$0]  %s1, 2048, %s29, [#allocation6], 128, 128, 8
    $region9: #{tpu_custom_call.1} parent=1 // pred_fallthru
      _
    // Predicated region
    $region10: #{tpu_custom_call.1} parent=1 // pred_check
      _
    $region11: #{tpu_custom_call.1} parent=1 // pred_check_branch
      %36 = sbr.rel (0) target = $region13
    $region12: #{tpu_custom_call.1} parent=1 // pred_region
      %s38 = ssub.s32 256, 256
      %39 = vsyncadd [#allocation6], %s38
      %s40 = sshll.u32 [#allocation7], 4
      %s41 = int_to_ptr.vmem [resolvable:$true] %s40
      %46 = dma.hbm_to_vmem [thread:$0]  %s2, 256, %s41, [#allocation6], 128, 128, 8
    $region13: #{tpu_custom_call.1} parent=1 // pred_fallthru
      _
    // Predicated region
    $region14: #{tpu_custom_call.1} parent=1 // pred_check
      _
    $region15: #{tpu_custom_call.1} parent=1 // pred_check_branch
      %48 = sbr.rel (0) target = $region17
    $region16: #{tpu_custom_call.1} parent=1 // pred_region
      %49 = dma.done [#allocation3], 256
    $region17: #{tpu_custom_call.1} parent=1 // pred_fallthru
      _
    // Predicated region
    $region18: #{tpu_custom_call.1} parent=1 // pred_check
      _
    $region19: #{tpu_custom_call.1} parent=1 // pred_check_branch
      %51 = sbr.rel (0) target = $region21
    $region20: #{tpu_custom_call.1} parent=1 // pred_region
      %52 = dma.done [#allocation6], 2048
    $region21: #{tpu_custom_call.1} parent=1 // pred_fallthru
      _
    // Predicated region
    $region22: #{tpu_custom_call.1} parent=1 // pred_check
      _
    $region23: #{tpu_custom_call.1} parent=1 // pred_check_branch
      %54 = sbr.rel (0) target = $region25
    $region24: #{tpu_custom_call.1} parent=1 // pred_region
      %55 = dma.done [#allocation6], 256
    $region25: #{tpu_custom_call.1} parent=1 // pred_fallthru
      _
    %v56 = vld [vmem:[#allocation2] sm:$0xff]
    %v57 = vld [vmem:[#allocation2 + $0x8] sm:$0xff]
    %v58 = vld [vmem:[#allocation5] sm:$0xff]
    %v59 = vld [vmem:[#allocation5 + $0x8] sm:$0xff]
    %v60 = vld [vmem:[#allocation5 + $0x10] sm:$0xff]
    %v61 = vld [vmem:[#allocation5 + $0x18] sm:$0xff]
    %v62 = vld [vmem:[#allocation5 + $0x20] sm:$0xff]
    %v63 = vld [vmem:[#allocation5 + $0x28] sm:$0xff]
    %v64 = vld [vmem:[#allocation5 + $0x30] sm:$0xff]
    %v65 = vld [vmem:[#allocation5 + $0x38] sm:$0xff]
    %v66 = vld [vmem:[#allocation5 + $0x40] sm:$0xff]
    %v67 = vld [vmem:[#allocation5 + $0x48] sm:$0xff]
    %v68 = vld [vmem:[#allocation5 + $0x50] sm:$0xff]
    %v69 = vld [vmem:[#allocation5 + $0x58] sm:$0xff]
    %v70 = vld [vmem:[#allocation5 + $0x60] sm:$0xff]
    %v71 = vld [vmem:[#allocation5 + $0x68] sm:$0xff]
    %v72 = vld [vmem:[#allocation5 + $0x70] sm:$0xff]
    %v73 = vld [vmem:[#allocation5 + $0x78] sm:$0xff]
    %74 = vmatprep.subr.mxu0 0.0
    %75 = vmatpush1.msra.mxu0 %v58
    %76 = vmatprep.subr.mxu0 0.0
    %77 = vmatpush1.msra.mxu0 %v59
    %78 = vmatprep.subr.mxu0 0.0
    %79 = vmatpush1.msra.mxu0 %v60
    %80 = vmatprep.subr.mxu0 0.0
    %81 = vmatpush1.msra.mxu0 %v61
    %82 = vmatprep.subr.mxu0 0.0
    %83 = vmatpush1.msra.mxu0 %v62
    %84 = vmatprep.subr.mxu0 0.0
    %85 = vmatpush1.msra.mxu0 %v63
    %86 = vmatprep.subr.mxu0 0.0
    %87 = vmatpush1.msra.mxu0 %v64
    %88 = vmatprep.subr.mxu0 0.0
    %89 = vmatpush1.msra.mxu0 %v65
    %90 = vmatprep.subr.mxu0 0.0
    %91 = vmatpush1.msra.mxu0 %v66
    %92 = vmatprep.subr.mxu0 0.0
    %93 = vmatpush1.msra.mxu0 %v67
    %94 = vmatprep.subr.mxu0 0.0
    %95 = vmatpush1.msra.mxu0 %v68
    %96 = vmatprep.subr.mxu0 0.0
    %97 = vmatpush1.msra.mxu0 %v69
    %98 = vmatprep.subr.mxu0 0.0
    %99 = vmatpush1.msra.mxu0 %v70
    %100 = vmatprep.subr.mxu0 0.0
    %101 = vmatpush1.msra.mxu0 %v71
    %102 = vmatprep.subr.mxu0 0.0
    %103 = vmatpush1.msra.mxu0 %v72
    %104 = vmatprep.subr.mxu0 0.0
    %105 = vmatpush1.msra.mxu0 %v73
    %106 = vmatprep.subr.mxu0 0.0
    %107 = vmatpush1.msra.mxu0 0.0
    %108 = vmatprep.subr.mxu0 0.0
    %109 = vmatpush1.msra.mxu0 0.0
    %110 = vmatprep.subr.mxu0 0.0
    %111 = vmatpush1.msra.mxu0 0.0
    %112 = vmatprep.subr.mxu0 0.0
    %113 = vmatpush1.msra.mxu0 0.0
    %114 = vmatprep.subr.mxu0 0.0
    %115 = vmatpush1.msra.mxu0 0.0
    %116 = vmatprep.subr.mxu0 0.0
    %117 = vmatpush1.msra.mxu0 0.0
    %118 = vmatprep.subr.mxu0 0.0
    %119 = vmatpush1.msra.mxu0 0.0
    %120 = vmatprep.subr.mxu0 0.0
    %121 = vmatpush1.msra.mxu0 0.0
    %122 = vmatprep.subr.mxu0 0.0
    %123 = vmatpush1.msra.mxu0 0.0
    %124 = vmatprep.subr.mxu0 0.0
    %125 = vmatpush1.msra.mxu0 0.0
    %126 = vmatprep.subr.mxu0 0.0
    %127 = vmatpush1.msra.mxu0 0.0
    %128 = vmatprep.subr.mxu0 0.0
    %129 = vmatpush1.msra.mxu0 0.0
    %130 = vmatprep.subr.mxu0 0.0
    %131 = vmatpush1.msra.mxu0 0.0
    %132 = vmatprep.subr.mxu0 0.0
    %133 = vmatpush1.msra.mxu0 0.0
    %134 = vmatprep.subr.mxu0 0.0
    %135 = vmatpush1.msra.mxu0 0.0
    %136 = vmatprep.subr.mxu0 0.0
    %137 = vmatpush1.msra.mxu0 0.0
    %138 = vmatprep.mubr.f32.mxu0 0.0
    %139 = vmatmul.mubr.f32.gmra.mrb[0].mxu0 %v56
    %v140 = vpop.f32.mrb[0].mxu0
    %v141 = vadd.f32 0.0, %v140
    %v142 = vpop.f32.mrb[0].mxu0
    %143 = vmatprep.mubr.f32.mxu0 0.0
    %144 = vmatmul.mubr.f32.gmra.mrb[0].mxu0 %v57
    %v145 = vpop.f32.mrb[0].mxu0
    %v146 = vadd.f32 0.0, %v145
    %v147 = vpop.f32.mrb[0].mxu0
    %148 = vdwg.mxu0
    %v149 = vld [vmem:[#allocation7] sm:$0xff]
    %v150 = vld [vmem:[#allocation7 + $0x8] sm:$0xff]
    %vm151 = vcmask 130048
    %v153 = vsel %vm151, %v149, 0
    %v156 = vsel %vm151, %v150, 0
    %158 = vmatprep.subr.mxu0 0.0
    %159 = vmatpush1.msra.mxu0 %v141
    %160 = vmatprep.subr.mxu0 0.0
    %161 = vmatpush1.msra.mxu0 %v146
    %162 = vmatprep.subr.mxu0 0.0
    %163 = vmatpush1.msra.mxu0 0.0
    %164 = vmatprep.subr.mxu0 0.0
    %165 = vmatpush1.msra.mxu0 0.0
    %166 = vmatprep.subr.mxu0 0.0
    %167 = vmatpush1.msra.mxu0 0.0
    %168 = vmatprep.subr.mxu0 0.0
    %169 = vmatpush1.msra.mxu0 0.0
    %170 = vmatprep.subr.mxu0 0.0
    %171 = vmatpush1.msra.mxu0 0.0
    %172 = vmatprep.subr.mxu0 0.0
    %173 = vmatpush1.msra.mxu0 0.0
    %174 = vmatprep.subr.mxu0 0.0
    %175 = vmatpush1.msra.mxu0 0.0
    %176 = vmatprep.subr.mxu0 0.0
    %177 = vmatpush1.msra.mxu0 0.0
    %178 = vmatprep.subr.mxu0 0.0
    %179 = vmatpush1.msra.mxu0 0.0
    %180 = vmatprep.subr.mxu0 0.0
    %181 = vmatpush1.msra.mxu0 0.0
    %182 = vmatprep.subr.mxu0 0.0
    %183 = vmatpush1.msra.mxu0 0.0
    %184 = vmatprep.subr.mxu0 0.0
    %185 = vmatpush1.msra.mxu0 0.0
    %186 = vmatprep.subr.mxu0 0.0
    %187 = vmatpush1.msra.mxu0 0.0
    %188 = vmatprep.subr.mxu0 0.0
    %189 = vmatpush1.msra.mxu0 0.0
    %190 = vmatprep.subr.mxu0 0.0
    %191 = vmatpush1.msra.mxu0 0.0
    %192 = vmatprep.subr.mxu0 0.0
    %193 = vmatpush1.msra.mxu0 0.0
    %194 = vmatprep.subr.mxu0 0.0
    %195 = vmatpush1.msra.mxu0 0.0
    %196 = vmatprep.subr.mxu0 0.0
    %197 = vmatpush1.msra.mxu0 0.0
    %198 = vmatprep.subr.mxu0 0.0
    %199 = vmatpush1.msra.mxu0 0.0
    %200 = vmatprep.subr.mxu0 0.0
    %201 = vmatpush1.msra.mxu0 0.0
    %202 = vmatprep.subr.mxu0 0.0
    %203 = vmatpush1.msra.mxu0 0.0
    %204 = vmatprep.subr.mxu0 0.0
    %205 = vmatpush1.msra.mxu0 0.0
    %206 = vmatprep.subr.mxu0 0.0
    %207 = vmatpush1.msra.mxu0 0.0
    %208 = vmatprep.subr.mxu0 0.0
    %209 = vmatpush1.msra.mxu0 0.0
    %210 = vmatprep.subr.mxu0 0.0
    %211 = vmatpush1.msra.mxu0 0.0
    %212 = vmatprep.subr.mxu0 0.0
    %213 = vmatpush1.msra.mxu0 0.0
    %214 = vmatprep.subr.mxu0 0.0
    %215 = vmatpush1.msra.mxu0 0.0
    %216 = vmatprep.subr.mxu0 0.0
    %217 = vmatpush1.msra.mxu0 0.0
    %218 = vmatprep.subr.mxu0 0.0
    %219 = vmatpush1.msra.mxu0 0.0
    %220 = vmatprep.subr.mxu0 0.0
    %221 = vmatpush1.msra.mxu0 0.0
    %222 = vmatprep.mubr.f32.mxu0 0.0
    %223 = vmatmul.mubr.f32.gmra.mrb[0].mxu0 %v153
    %v224 = vpop.f32.mrb[0].mxu0
    %v225 = vadd.f32 0.0, %v224
    %v226 = vpop.f32.mrb[0].mxu0
    %227 = vmatprep.mubr.f32.mxu0 0.0
    %228 = vmatmul.mubr.f32.gmra.mrb[0].mxu0 %v156
    %v229 = vpop.f32.mrb[0].mxu0
    %v230 = vadd.f32 0.0, %v229
    %v231 = vpop.f32.mrb[0].mxu0
    %232 = vdwg.mxu0
    %233 = vst [vmem:[#allocation8] sm:$0xff] %v225
    %234 = vst [vmem:[#allocation8 + $0x8] sm:$0xff] %v230
    // Predicated region
    $region26: #{tpu_custom_call.1} parent=1 // pred_check
      _
    $region27: #{tpu_custom_call.1} parent=1 // pred_check_branch
      %236 = sbr.rel (0) target = $region29
    $region28: #{tpu_custom_call.1} parent=1 // pred_region
      %s238 = ssub.s32 256, 256
      %239 = vsyncadd [#allocation4], %s238
      %s240 = sshll.u32 [#allocation8], 4
      %s241 = int_to_ptr.vmem [resolvable:$true] %s240
      %246 = dma.vmem_to_hbm [thread:$0]  %s241, 256, %s3, [#allocation4], 128, 128, 8
    $region29: #{tpu_custom_call.1} parent=1 // pred_fallthru
      _
    // Predicated region
    $region30: #{tpu_custom_call.1} parent=1 // pred_check
      _
    $region31: #{tpu_custom_call.1} parent=1 // pred_check_branch
      %248 = sbr.rel (0) target = $region33
    $region32: #{tpu_custom_call.1} parent=1 // pred_region
      %249 = dma.done [#allocation4], 256
    $region33: #{tpu_custom_call.1} parent=1 // pred_fallthru
      _
    %250 = vsyncpa [#allocation3], 1
    %251 = vsyncpa [#allocation6], 1
    %252 = vsyncpa [#allocation4], 1

</llo_original>
